<compile_context>
chip_gen: v7x
topology: tpu7x:2x2x1
jax: 0.10.0
libtpu: 0.0.40
codegen_flags: <defaults>
</compile_context>

<pallas_src>
import functools

import jax
import jax.numpy as jnp
from jax import lax
from jax.experimental import pallas as pl
from jax.experimental.pallas import tpu as pltpu

_LANE = 128          # lane width
_MAX_T2 = 512        # max sublane rows per token tile: 512*128 = 64K tokens
_SUB_ROWS = 32       # rows per inner-loop step (4 f32 vregs per channel slab)
_VMEM_LIMIT = 48 * 1024 * 1024   # below physical VMEM on v5e/v6e/v7x


def _round_up(x, m):
    return ((x + m - 1) // m) * m


def _pick_rows(t2):
    """Rows per inner-loop step: largest of (32,16,8,...) dividing t2."""
    for r in (_SUB_ROWS, 16, 8, 4, 2, 1):
        if t2 % r == 0:
            return r
    return 1


def _prelu_linear_kernel(w_ref, b_ref, a_ref, x_ref, o_ref):
    # w_ref: (C_out, C) f32 SMEM    b_ref: (C_out,) f32 SMEM
    # a_ref: (1,)      f32 SMEM     x_ref: (1, C, T2, 128) f32 VMEM
    # o_ref: (1, C_out, T2, 128) f32 VMEM
    _, n_in, t2, _ = x_ref.shape
    n_out = o_ref.shape[1]
    alpha = a_ref[0]

    rows = _pick_rows(t2)        # static
    n_sub = t2 // rows           # static

    def body(i, carry):
        r0 = pl.multiple_of(i * rows, rows)
        # PReLU on a dense (rows, 128) slab of each input channel.
        xp = []
        for c in range(n_in):
            xc = x_ref[0, c, pl.ds(r0, rows), :]
            xp.append(jnp.where(xc > 0, xc, alpha * xc))
        # y[f] = sum_c w[f, c] * xp[c] + bias[f]   (scalar-vector FMAs on VPU)
        for f in range(n_out):
            acc = w_ref[f, 0] * xp[0]
            for c in range(1, n_in):
                acc = acc + w_ref[f, c] * xp[c]
            o_ref[0, f, pl.ds(r0, rows), :] = acc + b_ref[f]
        return carry

    if n_sub == 1:
        body(0, 0)
    else:
        # fori_loop (not a Python for) so live ranges stay bounded to one step.
        lax.fori_loop(0, n_sub, body, 0)


def _prelu_linear_lanewise(x4d, w, b, alpha1, *, t2):
    """x4d: (B, C, T, 128) f32 (sublane-packed tokens).  w: (C_out, C) f32
    (PyTorch-native orientation).  b: (C_out,) f32.  alpha1: (1,) f32.
    Returns (B, C_out, T, 128)."""
    B, C, T, L = x4d.shape
    C_out = w.shape[0]
    n_t = T // t2

    return pl.pallas_call(
        _prelu_linear_kernel,
        out_shape=jax.ShapeDtypeStruct((B, C_out, T, L), jnp.float32),
        grid_spec=pltpu.PrefetchScalarGridSpec(
            num_scalar_prefetch=0,
            grid=(B, n_t),
            in_specs=[
                pl.BlockSpec(memory_space=pltpu.SMEM),                 # weight
                pl.BlockSpec(memory_space=pltpu.SMEM),                 # bias
                pl.BlockSpec(memory_space=pltpu.SMEM),                 # alpha
                pl.BlockSpec((1, C, t2, L), lambda bi, ti: (bi, 0, ti, 0)),
            ],
            out_specs=pl.BlockSpec((1, C_out, t2, L),
                                   lambda bi, ti: (bi, 0, ti, 0)),
        ),
        compiler_params=pltpu.CompilerParams(
            dimension_semantics=("parallel", "parallel"),
            vmem_limit_bytes=_VMEM_LIMIT,
        ),
    )(w, b, alpha1, x4d)


@functools.partial(jax.jit, static_argnames=("num_speakers",))
def prelu_linear_forward(x, w, b, alpha, *, num_speakers):
    """x: (B, C, chunk, num_chunks) -> (B, C, num_speakers, chunk, num_chunks).

    w: (C*num_speakers, C) (PyTorch nn.Linear weight), b: (C*num_speakers,),
    alpha: scalar (shared PReLU parameter)."""
    B, C, H, W = x.shape
    S = num_speakers
    HW = H * W

    # Sublane-pack the token axis: (B, C, HW) -> (B, C, T, 128).  Free reshape
    # (no transpose) when HW is a multiple of 128 — the common case.
    hw_lane = _round_up(HW, _LANE)
    T = hw_lane // _LANE
    if T <= _MAX_T2:
        t2 = T                       # single token tile (full-dim block: legal)
        t_total = T
    else:
        t2 = _MAX_T2                 # multiple of 8 -> dense (8,128) tiling
        t_total = _round_up(T, t2)
    hw_total = t_total * _LANE

    x3d = x.reshape(B, C, HW)
    if hw_total != HW:
        # TODO(synk): handle the ragged last token tile in-kernel (masked
        # store on the final grid step) instead of a wrapper pad + slice; this
        # path is only hit when H*W is not a multiple of 128 (or doesn't tile).
        x3d = jnp.pad(x3d, ((0, 0), (0, 0), (0, hw_total - HW)))
    x4d = x3d.reshape(B, C, t_total, _LANE)

    w = jnp.asarray(w, jnp.float32)
    b = jnp.asarray(b, jnp.float32)
    a1 = jnp.asarray(alpha, jnp.float32).reshape(1)

    y4 = _prelu_linear_lanewise(x4d, w, b, a1, t2=t2)      # (B, C*S, T, 128)
    y = y4.reshape(B, C * S, hw_total)
    if hw_total != HW:
        y = y[:, :, :HW]                                    # drop token padding
    # Linear feature index f = c*S + s and token index = h*W + w, so this
    # reshape IS the PyTorch view + permute(0, 3, 4, 1, 2).
    return y.reshape(B, C, S, H, W)


if __name__ == "__main__":
    channels = 4
    num_speakers = 2
    B, chunk, num_chunks = 2, 16, 16                # H*W = 256 tokens

    key = jax.random.PRNGKey(0)
    kx, kw, kb = jax.random.split(key, 3)

    x = jax.random.normal(kx, (B, channels, chunk, num_chunks), jnp.float32)
    # parameter shapes match nn.Linear(channels, channels*num_speakers)
    w = jax.random.normal(kw, (channels * num_speakers, channels), jnp.float32) * 0.1
    b = jax.random.normal(kb, (channels * num_speakers,), jnp.float32) * 0.1
    alpha = jnp.float32(0.25)                       # nn.PReLU() default init

    out = prelu_linear_forward(x, w, b, alpha, num_speakers=num_speakers)
    jax.block_until_ready(out)

    # Reference in plain JAX, following the PyTorch op order exactly.
    xt = jnp.transpose(x, (0, 2, 3, 1))
    xp = jnp.where(xt > 0, xt, alpha * xt)
    ref = jnp.einsum("bhwc,fc->bhwf", xp, w,
                     precision=jax.lax.Precision.HIGHEST) + b
    ref = ref.reshape(B, chunk, num_chunks, channels, num_speakers)
    ref = jnp.transpose(ref, (0, 3, 4, 1, 2))

    assert out.shape == (B, channels, num_speakers, chunk, num_chunks)
    assert jnp.allclose(out, ref, atol=1e-5, rtol=1e-5)

    print("KERNEL_OK")
</pallas_src>

<mosaic_0001>
module attributes {stable_mosaic.version = 11 : i64} {
  func.func @_prelu_linear_kernel(%arg0: i32, %arg1: i32, %arg2: memref<8x4xf32, #tpu.memory_space<smem>>, %arg3: memref<8xf32, #tpu.memory_space<smem>>, %arg4: memref<1xf32, #tpu.memory_space<smem>>, %arg5: memref<1x4x2x128xf32, #tpu.memory_space<vmem>>, %arg6: memref<1x8x2x128xf32, #tpu.memory_space<vmem>>) attributes {dimension_semantics = [#tpu.dimension_semantics<parallel>, #tpu.dimension_semantics<parallel>], iteration_bounds = array<i64: 2, 1>, scalar_prefetch = 0 : i64, scratch_operands = 0 : i64, tpu.core_type = #tpu.core_type<tc>, window_params = [{transform_indices = @transform_0, window_bounds = array<i64: 8, 4>}, {transform_indices = @transform_1, window_bounds = array<i64: 8>}, {transform_indices = @transform_2, window_bounds = array<i64: 1>}, {transform_indices = @transform_3, window_bounds = array<i64: 1, 4, 2, 128>}, {transform_indices = @transform_4, window_bounds = array<i64: 1, 8, 2, 128>}]} {
    %c0 = arith.constant 0 : index
    %0 = memref.load %arg4[%c0] : memref<1xf32, #tpu.memory_space<smem>>
    %c0_i32 = arith.constant 0 : i32
    %1 = tpu.assume_multiple %c0_i32, 2 : i32
    %c0_0 = arith.constant 0 : index
    %c0_1 = arith.constant 0 : index
    %2 = arith.index_cast %1 : i32 to index
    %c0_2 = arith.constant 0 : index
    %3 = vector.load %arg5[%c0_0, %c0_1, %2, %c0_2] : memref<1x4x2x128xf32, #tpu.memory_space<vmem>>, vector<1x1x2x128xf32>
    %4 = vector.shape_cast %3 : vector<1x1x2x128xf32> to vector<2x128xf32>
    %cst = arith.constant 0.000000e+00 : f32
    %5 = vector.broadcast %cst : f32 to vector<2x128xf32>
    %6 = arith.cmpf ogt, %4, %5 : vector<2x128xf32>
    %7 = vector.broadcast %0 : f32 to vector<2x128xf32>
    %8 = arith.mulf %7, %4 : vector<2x128xf32>
    %9 = arith.select %6, %4, %8 : vector<2x128xi1>, vector<2x128xf32>
    %c0_3 = arith.constant 0 : index
    %c1 = arith.constant 1 : index
    %10 = arith.index_cast %1 : i32 to index
    %c0_4 = arith.constant 0 : index
    %11 = vector.load %arg5[%c0_3, %c1, %10, %c0_4] : memref<1x4x2x128xf32, #tpu.memory_space<vmem>>, vector<1x1x2x128xf32>
    %12 = vector.shape_cast %11 : vector<1x1x2x128xf32> to vector<2x128xf32>
    %cst_5 = arith.constant 0.000000e+00 : f32
    %13 = vector.broadcast %cst_5 : f32 to vector<2x128xf32>
    %14 = arith.cmpf ogt, %12, %13 : vector<2x128xf32>
    %15 = vector.broadcast %0 : f32 to vector<2x128xf32>
    %16 = arith.mulf %15, %12 : vector<2x128xf32>
    %17 = arith.select %14, %12, %16 : vector<2x128xi1>, vector<2x128xf32>
    %c0_6 = arith.constant 0 : index
    %c2 = arith.constant 2 : index
    %18 = arith.index_cast %1 : i32 to index
    %c0_7 = arith.constant 0 : index
    %19 = vector.load %arg5[%c0_6, %c2, %18, %c0_7] : memref<1x4x2x128xf32, #tpu.memory_space<vmem>>, vector<1x1x2x128xf32>
    %20 = vector.shape_cast %19 : vector<1x1x2x128xf32> to vector<2x128xf32>
    %cst_8 = arith.constant 0.000000e+00 : f32
    %21 = vector.broadcast %cst_8 : f32 to vector<2x128xf32>
    %22 = arith.cmpf ogt, %20, %21 : vector<2x128xf32>
    %23 = vector.broadcast %0 : f32 to vector<2x128xf32>
    %24 = arith.mulf %23, %20 : vector<2x128xf32>
    %25 = arith.select %22, %20, %24 : vector<2x128xi1>, vector<2x128xf32>
    %c0_9 = arith.constant 0 : index
    %c3 = arith.constant 3 : index
    %26 = arith.index_cast %1 : i32 to index
    %c0_10 = arith.constant 0 : index
    %27 = vector.load %arg5[%c0_9, %c3, %26, %c0_10] : memref<1x4x2x128xf32, #tpu.memory_space<vmem>>, vector<1x1x2x128xf32>
    %28 = vector.shape_cast %27 : vector<1x1x2x128xf32> to vector<2x128xf32>
    %cst_11 = arith.constant 0.000000e+00 : f32
    %29 = vector.broadcast %cst_11 : f32 to vector<2x128xf32>
    %30 = arith.cmpf ogt, %28, %29 : vector<2x128xf32>
    %31 = vector.broadcast %0 : f32 to vector<2x128xf32>
    %32 = arith.mulf %31, %28 : vector<2x128xf32>
    %33 = arith.select %30, %28, %32 : vector<2x128xi1>, vector<2x128xf32>
    %c0_12 = arith.constant 0 : index
    %c0_13 = arith.constant 0 : index
    %34 = memref.load %arg2[%c0_12, %c0_13] : memref<8x4xf32, #tpu.memory_space<smem>>
    %35 = vector.broadcast %34 : f32 to vector<2x128xf32>
    %36 = arith.mulf %35, %9 : vector<2x128xf32>
    %c0_14 = arith.constant 0 : index
    %c1_15 = arith.constant 1 : index
    %37 = memref.load %arg2[%c0_14, %c1_15] : memref<8x4xf32, #tpu.memory_space<smem>>
    %38 = vector.broadcast %37 : f32 to vector<2x128xf32>
    %39 = arith.mulf %38, %17 : vector<2x128xf32>
    %40 = arith.addf %36, %39 : vector<2x128xf32>
    %c0_16 = arith.constant 0 : index
    %c2_17 = arith.constant 2 : index
    %41 = memref.load %arg2[%c0_16, %c2_17] : memref<8x4xf32, #tpu.memory_space<smem>>
    %42 = vector.broadcast %41 : f32 to vector<2x128xf32>
    %43 = arith.mulf %42, %25 : vector<2x128xf32>
    %44 = arith.addf %40, %43 : vector<2x128xf32>
    %c0_18 = arith.constant 0 : index
    %c3_19 = arith.constant 3 : index
    %45 = memref.load %arg2[%c0_18, %c3_19] : memref<8x4xf32, #tpu.memory_space<smem>>
    %46 = vector.broadcast %45 : f32 to vector<2x128xf32>
    %47 = arith.mulf %46, %33 : vector<2x128xf32>
    %48 = arith.addf %44, %47 : vector<2x128xf32>
    %c0_20 = arith.constant 0 : index
    %49 = memref.load %arg3[%c0_20] : memref<8xf32, #tpu.memory_space<smem>>
    %50 = vector.broadcast %49 : f32 to vector<2x128xf32>
    %51 = arith.addf %48, %50 : vector<2x128xf32>
    %c0_21 = arith.constant 0 : index
    %c0_22 = arith.constant 0 : index
    %52 = arith.index_cast %1 : i32 to index
    %c0_23 = arith.constant 0 : index
    %53 = vector.load %arg6[%c0_21, %c0_22, %52, %c0_23] : memref<1x8x2x128xf32, #tpu.memory_space<vmem>>, vector<1x1x2x128xf32>
    %54 = vector.shape_cast %53 : vector<1x1x2x128xf32> to vector<2x128xf32>
    %55 = vector.shape_cast %51 : vector<2x128xf32> to vector<1x1x2x128xf32>
    tpu.vector_store %arg6[%c0_21, %c0_22, %52, %c0_23], %55 {strides = array<i32>} : memref<1x8x2x128xf32, #tpu.memory_space<vmem>>, vector<1x1x2x128xf32>,
    %c1_24 = arith.constant 1 : index
    %c0_25 = arith.constant 0 : index
    %56 = memref.load %arg2[%c1_24, %c0_25] : memref<8x4xf32, #tpu.memory_space<smem>>
    %57 = vector.broadcast %56 : f32 to vector<2x128xf32>
    %58 = arith.mulf %57, %9 : vector<2x128xf32>
    %c1_26 = arith.constant 1 : index
    %c1_27 = arith.constant 1 : index
    %59 = memref.load %arg2[%c1_26, %c1_27] : memref<8x4xf32, #tpu.memory_space<smem>>
    %60 = vector.broadcast %59 : f32 to vector<2x128xf32>
    %61 = arith.mulf %60, %17 : vector<2x128xf32>
    %62 = arith.addf %58, %61 : vector<2x128xf32>
    %c1_28 = arith.constant 1 : index
    %c2_29 = arith.constant 2 : index
    %63 = memref.load %arg2[%c1_28, %c2_29] : memref<8x4xf32, #tpu.memory_space<smem>>
    %64 = vector.broadcast %63 : f32 to vector<2x128xf32>
    %65 = arith.mulf %64, %25 : vector<2x128xf32>
    %66 = arith.addf %62, %65 : vector<2x128xf32>
    %c1_30 = arith.constant 1 : index
    %c3_31 = arith.constant 3 : index
    %67 = memref.load %arg2[%c1_30, %c3_31] : memref<8x4xf32, #tpu.memory_space<smem>>
    %68 = vector.broadcast %67 : f32 to vector<2x128xf32>
    %69 = arith.mulf %68, %33 : vector<2x128xf32>
    %70 = arith.addf %66, %69 : vector<2x128xf32>
    %c1_32 = arith.constant 1 : index
    %71 = memref.load %arg3[%c1_32] : memref<8xf32, #tpu.memory_space<smem>>
    %72 = vector.broadcast %71 : f32 to vector<2x128xf32>
    %73 = arith.addf %70, %72 : vector<2x128xf32>
    %c0_33 = arith.constant 0 : index
    %c1_34 = arith.constant 1 : index
    %74 = arith.index_cast %1 : i32 to index
    %c0_35 = arith.constant 0 : index
    %75 = vector.load %arg6[%c0_33, %c1_34, %74, %c0_35] : memref<1x8x2x128xf32, #tpu.memory_space<vmem>>, vector<1x1x2x128xf32>
    %76 = vector.shape_cast %75 : vector<1x1x2x128xf32> to vector<2x128xf32>
    %77 = vector.shape_cast %73 : vector<2x128xf32> to vector<1x1x2x128xf32>
    tpu.vector_store %arg6[%c0_33, %c1_34, %74, %c0_35], %77 {strides = array<i32>} : memref<1x8x2x128xf32, #tpu.memory_space<vmem>>, vector<1x1x2x128xf32>,
    %c2_36 = arith.constant 2 : index
    %c0_37 = arith.constant 0 : index
    %78 = memref.load %arg2[%c2_36, %c0_37] : memref<8x4xf32, #tpu.memory_space<smem>>
    %79 = vector.broadcast %78 : f32 to vector<2x128xf32>
    %80 = arith.mulf %79, %9 : vector<2x128xf32>
    %c2_38 = arith.constant 2 : index
    %c1_39 = arith.constant 1 : index
    %81 = memref.load %arg2[%c2_38, %c1_39] : memref<8x4xf32, #tpu.memory_space<smem>>
    %82 = vector.broadcast %81 : f32 to vector<2x128xf32>
    %83 = arith.mulf %82, %17 : vector<2x128xf32>
    %84 = arith.addf %80, %83 : vector<2x128xf32>
    %c2_40 = arith.constant 2 : index
    %c2_41 = arith.constant 2 : index
    %85 = memref.load %arg2[%c2_40, %c2_41] : memref<8x4xf32, #tpu.memory_space<smem>>
    %86 = vector.broadcast %85 : f32 to vector<2x128xf32>
    %87 = arith.mulf %86, %25 : vector<2x128xf32>
    %88 = arith.addf %84, %87 : vector<2x128xf32>
    %c2_42 = arith.constant 2 : index
    %c3_43 = arith.constant 3 : index
    %89 = memref.load %arg2[%c2_42, %c3_43] : memref<8x4xf32, #tpu.memory_space<smem>>
    %90 = vector.broadcast %89 : f32 to vector<2x128xf32>
    %91 = arith.mulf %90, %33 : vector<2x128xf32>
    %92 = arith.addf %88, %91 : vector<2x128xf32>
    %c2_44 = arith.constant 2 : index
    %93 = memref.load %arg3[%c2_44] : memref<8xf32, #tpu.memory_space<smem>>
    %94 = vector.broadcast %93 : f32 to vector<2x128xf32>
    %95 = arith.addf %92, %94 : vector<2x128xf32>
    %c0_45 = arith.constant 0 : index
    %c2_46 = arith.constant 2 : index
    %96 = arith.index_cast %1 : i32 to index
    %c0_47 = arith.constant 0 : index
    %97 = vector.load %arg6[%c0_45, %c2_46, %96, %c0_47] : memref<1x8x2x128xf32, #tpu.memory_space<vmem>>, vector<1x1x2x128xf32>
    %98 = vector.shape_cast %97 : vector<1x1x2x128xf32> to vector<2x128xf32>
    %99 = vector.shape_cast %95 : vector<2x128xf32> to vector<1x1x2x128xf32>
    tpu.vector_store %arg6[%c0_45, %c2_46, %96, %c0_47], %99 {strides = array<i32>} : memref<1x8x2x128xf32, #tpu.memory_space<vmem>>, vector<1x1x2x128xf32>,
    %c3_48 = arith.constant 3 : index
    %c0_49 = arith.constant 0 : index
    %100 = memref.load %arg2[%c3_48, %c0_49] : memref<8x4xf32, #tpu.memory_space<smem>>
    %101 = vector.broadcast %100 : f32 to vector<2x128xf32>
    %102 = arith.mulf %101, %9 : vector<2x128xf32>
    %c3_50 = arith.constant 3 : index
    %c1_51 = arith.constant 1 : index
    %103 = memref.load %arg2[%c3_50, %c1_51] : memref<8x4xf32, #tpu.memory_space<smem>>
    %104 = vector.broadcast %103 : f32 to vector<2x128xf32>
    %105 = arith.mulf %104, %17 : vector<2x128xf32>
    %106 = arith.addf %102, %105 : vector<2x128xf32>
    %c3_52 = arith.constant 3 : index
    %c2_53 = arith.constant 2 : index
    %107 = memref.load %arg2[%c3_52, %c2_53] : memref<8x4xf32, #tpu.memory_space<smem>>
    %108 = vector.broadcast %107 : f32 to vector<2x128xf32>
    %109 = arith.mulf %108, %25 : vector<2x128xf32>
    %110 = arith.addf %106, %109 : vector<2x128xf32>
    %c3_54 = arith.constant 3 : index
    %c3_55 = arith.constant 3 : index
    %111 = memref.load %arg2[%c3_54, %c3_55] : memref<8x4xf32, #tpu.memory_space<smem>>
    %112 = vector.broadcast %111 : f32 to vector<2x128xf32>
    %113 = arith.mulf %112, %33 : vector<2x128xf32>
    %114 = arith.addf %110, %113 : vector<2x128xf32>
    %c3_56 = arith.constant 3 : index
    %115 = memref.load %arg3[%c3_56] : memref<8xf32, #tpu.memory_space<smem>>
    %116 = vector.broadcast %115 : f32 to vector<2x128xf32>
    %117 = arith.addf %114, %116 : vector<2x128xf32>
    %c0_57 = arith.constant 0 : index
    %c3_58 = arith.constant 3 : index
    %118 = arith.index_cast %1 : i32 to index
    %c0_59 = arith.constant 0 : index
    %119 = vector.load %arg6[%c0_57, %c3_58, %118, %c0_59] : memref<1x8x2x128xf32, #tpu.memory_space<vmem>>, vector<1x1x2x128xf32>
    %120 = vector.shape_cast %119 : vector<1x1x2x128xf32> to vector<2x128xf32>
    %121 = vector.shape_cast %117 : vector<2x128xf32> to vector<1x1x2x128xf32>
    tpu.vector_store %arg6[%c0_57, %c3_58, %118, %c0_59], %121 {strides = array<i32>} : memref<1x8x2x128xf32, #tpu.memory_space<vmem>>, vector<1x1x2x128xf32>,
    %c4 = arith.constant 4 : index
    %c0_60 = arith.constant 0 : index
    %122 = memref.load %arg2[%c4, %c0_60] : memref<8x4xf32, #tpu.memory_space<smem>>
    %123 = vector.broadcast %122 : f32 to vector<2x128xf32>
    %124 = arith.mulf %123, %9 : vector<2x128xf32>
    %c4_61 = arith.constant 4 : index
    %c1_62 = arith.constant 1 : index
    %125 = memref.load %arg2[%c4_61, %c1_62] : memref<8x4xf32, #tpu.memory_space<smem>>
    %126 = vector.broadcast %125 : f32 to vector<2x128xf32>
    %127 = arith.mulf %126, %17 : vector<2x128xf32>
    %128 = arith.addf %124, %127 : vector<2x128xf32>
    %c4_63 = arith.constant 4 : index
    %c2_64 = arith.constant 2 : index
    %129 = memref.load %arg2[%c4_63, %c2_64] : memref<8x4xf32, #tpu.memory_space<smem>>
    %130 = vector.broadcast %129 : f32 to vector<2x128xf32>
    %131 = arith.mulf %130, %25 : vector<2x128xf32>
    %132 = arith.addf %128, %131 : vector<2x128xf32>
    %c4_65 = arith.constant 4 : index
    %c3_66 = arith.constant 3 : index
    %133 = memref.load %arg2[%c4_65, %c3_66] : memref<8x4xf32, #tpu.memory_space<smem>>
    %134 = vector.broadcast %133 : f32 to vector<2x128xf32>
    %135 = arith.mulf %134, %33 : vector<2x128xf32>
    %136 = arith.addf %132, %135 : vector<2x128xf32>
    %c4_67 = arith.constant 4 : index
    %137 = memref.load %arg3[%c4_67] : memref<8xf32, #tpu.memory_space<smem>>
    %138 = vector.broadcast %137 : f32 to vector<2x128xf32>
    %139 = arith.addf %136, %138 : vector<2x128xf32>
    %c0_68 = arith.constant 0 : index
    %c4_69 = arith.constant 4 : index
    %140 = arith.index_cast %1 : i32 to index
    %c0_70 = arith.constant 0 : index
    %141 = vector.load %arg6[%c0_68, %c4_69, %140, %c0_70] : memref<1x8x2x128xf32, #tpu.memory_space<vmem>>, vector<1x1x2x128xf32>
    %142 = vector.shape_cast %141 : vector<1x1x2x128xf32> to vector<2x128xf32>
    %143 = vector.shape_cast %139 : vector<2x128xf32> to vector<1x1x2x128xf32>
    tpu.vector_store %arg6[%c0_68, %c4_69, %140, %c0_70], %143 {strides = array<i32>} : memref<1x8x2x128xf32, #tpu.memory_space<vmem>>, vector<1x1x2x128xf32>,
    %c5 = arith.constant 5 : index
    %c0_71 = arith.constant 0 : index
    %144 = memref.load %arg2[%c5, %c0_71] : memref<8x4xf32, #tpu.memory_space<smem>>
    %145 = vector.broadcast %144 : f32 to vector<2x128xf32>
    %146 = arith.mulf %145, %9 : vector<2x128xf32>
    %c5_72 = arith.constant 5 : index
    %c1_73 = arith.constant 1 : index
    %147 = memref.load %arg2[%c5_72, %c1_73] : memref<8x4xf32, #tpu.memory_space<smem>>
    %148 = vector.broadcast %147 : f32 to vector<2x128xf32>
    %149 = arith.mulf %148, %17 : vector<2x128xf32>
    %150 = arith.addf %146, %149 : vector<2x128xf32>
    %c5_74 = arith.constant 5 : index
    %c2_75 = arith.constant 2 : index
    %151 = memref.load %arg2[%c5_74, %c2_75] : memref<8x4xf32, #tpu.memory_space<smem>>
    %152 = vector.broadcast %151 : f32 to vector<2x128xf32>
    %153 = arith.mulf %152, %25 : vector<2x128xf32>
    %154 = arith.addf %150, %153 : vector<2x128xf32>
    %c5_76 = arith.constant 5 : index
    %c3_77 = arith.constant 3 : index
    %155 = memref.load %arg2[%c5_76, %c3_77] : memref<8x4xf32, #tpu.memory_space<smem>>
    %156 = vector.broadcast %155 : f32 to vector<2x128xf32>
    %157 = arith.mulf %156, %33 : vector<2x128xf32>
    %158 = arith.addf %154, %157 : vector<2x128xf32>
    %c5_78 = arith.constant 5 : index
    %159 = memref.load %arg3[%c5_78] : memref<8xf32, #tpu.memory_space<smem>>
    %160 = vector.broadcast %159 : f32 to vector<2x128xf32>
    %161 = arith.addf %158, %160 : vector<2x128xf32>
    %c0_79 = arith.constant 0 : index
    %c5_80 = arith.constant 5 : index
    %162 = arith.index_cast %1 : i32 to index
    %c0_81 = arith.constant 0 : index
    %163 = vector.load %arg6[%c0_79, %c5_80, %162, %c0_81] : memref<1x8x2x128xf32, #tpu.memory_space<vmem>>, vector<1x1x2x128xf32>
    %164 = vector.shape_cast %163 : vector<1x1x2x128xf32> to vector<2x128xf32>
    %165 = vector.shape_cast %161 : vector<2x128xf32> to vector<1x1x2x128xf32>
    tpu.vector_store %arg6[%c0_79, %c5_80, %162, %c0_81], %165 {strides = array<i32>} : memref<1x8x2x128xf32, #tpu.memory_space<vmem>>, vector<1x1x2x128xf32>,
    %c6 = arith.constant 6 : index
    %c0_82 = arith.constant 0 : index
    %166 = memref.load %arg2[%c6, %c0_82] : memref<8x4xf32, #tpu.memory_space<smem>>
    %167 = vector.broadcast %166 : f32 to vector<2x128xf32>
    %168 = arith.mulf %167, %9 : vector<2x128xf32>
    %c6_83 = arith.constant 6 : index
    %c1_84 = arith.constant 1 : index
    %169 = memref.load %arg2[%c6_83, %c1_84] : memref<8x4xf32, #tpu.memory_space<smem>>
    %170 = vector.broadcast %169 : f32 to vector<2x128xf32>
    %171 = arith.mulf %170, %17 : vector<2x128xf32>
    %172 = arith.addf %168, %171 : vector<2x128xf32>
    %c6_85 = arith.constant 6 : index
    %c2_86 = arith.constant 2 : index
    %173 = memref.load %arg2[%c6_85, %c2_86] : memref<8x4xf32, #tpu.memory_space<smem>>
    %174 = vector.broadcast %173 : f32 to vector<2x128xf32>
    %175 = arith.mulf %174, %25 : vector<2x128xf32>
    %176 = arith.addf %172, %175 : vector<2x128xf32>
    %c6_87 = arith.constant 6 : index
    %c3_88 = arith.constant 3 : index
    %177 = memref.load %arg2[%c6_87, %c3_88] : memref<8x4xf32, #tpu.memory_space<smem>>
    %178 = vector.broadcast %177 : f32 to vector<2x128xf32>
    %179 = arith.mulf %178, %33 : vector<2x128xf32>
    %180 = arith.addf %176, %179 : vector<2x128xf32>
    %c6_89 = arith.constant 6 : index
    %181 = memref.load %arg3[%c6_89] : memref<8xf32, #tpu.memory_space<smem>>
    %182 = vector.broadcast %181 : f32 to vector<2x128xf32>
    %183 = arith.addf %180, %182 : vector<2x128xf32>
    %c0_90 = arith.constant 0 : index
    %c6_91 = arith.constant 6 : index
    %184 = arith.index_cast %1 : i32 to index
    %c0_92 = arith.constant 0 : index
    %185 = vector.load %arg6[%c0_90, %c6_91, %184, %c0_92] : memref<1x8x2x128xf32, #tpu.memory_space<vmem>>, vector<1x1x2x128xf32>
    %186 = vector.shape_cast %185 : vector<1x1x2x128xf32> to vector<2x128xf32>
    %187 = vector.shape_cast %183 : vector<2x128xf32> to vector<1x1x2x128xf32>
    tpu.vector_store %arg6[%c0_90, %c6_91, %184, %c0_92], %187 {strides = array<i32>} : memref<1x8x2x128xf32, #tpu.memory_space<vmem>>, vector<1x1x2x128xf32>,
    %c7 = arith.constant 7 : index
    %c0_93 = arith.constant 0 : index
    %188 = memref.load %arg2[%c7, %c0_93] : memref<8x4xf32, #tpu.memory_space<smem>>
    %189 = vector.broadcast %188 : f32 to vector<2x128xf32>
    %190 = arith.mulf %189, %9 : vector<2x128xf32>
    %c7_94 = arith.constant 7 : index
    %c1_95 = arith.constant 1 : index
    %191 = memref.load %arg2[%c7_94, %c1_95] : memref<8x4xf32, #tpu.memory_space<smem>>
    %192 = vector.broadcast %191 : f32 to vector<2x128xf32>
    %193 = arith.mulf %192, %17 : vector<2x128xf32>
    %194 = arith.addf %190, %193 : vector<2x128xf32>
    %c7_96 = arith.constant 7 : index
    %c2_97 = arith.constant 2 : index
    %195 = memref.load %arg2[%c7_96, %c2_97] : memref<8x4xf32, #tpu.memory_space<smem>>
    %196 = vector.broadcast %195 : f32 to vector<2x128xf32>
    %197 = arith.mulf %196, %25 : vector<2x128xf32>
    %198 = arith.addf %194, %197 : vector<2x128xf32>
    %c7_98 = arith.constant 7 : index
    %c3_99 = arith.constant 3 : index
    %199 = memref.load %arg2[%c7_98, %c3_99] : memref<8x4xf32, #tpu.memory_space<smem>>
    %200 = vector.broadcast %199 : f32 to vector<2x128xf32>
    %201 = arith.mulf %200, %33 : vector<2x128xf32>
    %202 = arith.addf %198, %201 : vector<2x128xf32>
    %c7_100 = arith.constant 7 : index
    %203 = memref.load %arg3[%c7_100] : memref<8xf32, #tpu.memory_space<smem>>
    %204 = vector.broadcast %203 : f32 to vector<2x128xf32>
    %205 = arith.addf %202, %204 : vector<2x128xf32>
    %c0_101 = arith.constant 0 : index
    %c7_102 = arith.constant 7 : index
    %206 = arith.index_cast %1 : i32 to index
    %c0_103 = arith.constant 0 : index
    %207 = vector.load %arg6[%c0_101, %c7_102, %206, %c0_103] : memref<1x8x2x128xf32, #tpu.memory_space<vmem>>, vector<1x1x2x128xf32>
    %208 = vector.shape_cast %207 : vector<1x1x2x128xf32> to vector<2x128xf32>
    %209 = vector.shape_cast %205 : vector<2x128xf32> to vector<1x1x2x128xf32>
    tpu.vector_store %arg6[%c0_101, %c7_102, %206, %c0_103], %209 {strides = array<i32>} : memref<1x8x2x128xf32, #tpu.memory_space<vmem>>, vector<1x1x2x128xf32>,
    return
  }
  func.func @transform_0(%arg0: i32, %arg1: i32) -> (i32, i32) {
    %c0_i32 = arith.constant 0 : i32
    %c0_i32_0 = arith.constant 0 : i32
    %c0_i32_1 = arith.constant 0 : i32
    return %c0_i32, %c0_i32_0 : i32, i32
  }
  func.func @transform_1(%arg0: i32, %arg1: i32) -> i32 {
    %c0_i32 = arith.constant 0 : i32
    %c0_i32_0 = arith.constant 0 : i32
    return %c0_i32 : i32
  }
  func.func @transform_2(%arg0: i32, %arg1: i32) -> i32 {
    %c0_i32 = arith.constant 0 : i32
    %c0_i32_0 = arith.constant 0 : i32
    return %c0_i32 : i32
  }
  func.func @transform_3(%arg0: i32, %arg1: i32) -> (i32, i32, i32, i32) {
    %c0_i32 = arith.constant 0 : i32
    %c0_i32_0 = arith.constant 0 : i32
    %c0_i32_1 = arith.constant 0 : i32
    return %arg0, %c0_i32, %arg1, %c0_i32_0 : i32, i32, i32, i32
  }
  func.func @transform_4(%arg0: i32, %arg1: i32) -> (i32, i32, i32, i32) {
    %c0_i32 = arith.constant 0 : i32
    %c0_i32_0 = arith.constant 0 : i32
    %c0_i32_1 = arith.constant 0 : i32
    return %arg0, %c0_i32, %arg1, %c0_i32_0 : i32, i32, i32, i32
  }
}

</mosaic_0001>

<llo_original>
// kernel: prelu_linear_forward.1
$region0: #{prelu_linear_forward.1}
  #allocation0 [shape = 'u32[]', space=smem, size = 0x4, offset = 0x4, fixed_abs, tag = 'smem constant byte address 0x4 - core index']
  #allocation1 [shape = 'u32[144,128]{1,0:T(1,128)}', space=vmem, size = 0x12000, scoped, tag = 'internal scratch']
  #allocation2 [shape = 'f32[1]{0:T(128)S(6)}', space=smem, size = 0x200, scoped, tag = 'scoped memory for prelu_linear_forward.1']
  %s0 = inlined_call_operand.vmem [shape: f32[8,4], index: 0, kind: input, shape index: {}]
  %s1 = inlined_call_operand.vmem [shape: f32[8], index: 1, kind: input, shape index: {}]
  %s2 = inlined_call_operand.<no memory space> [shape: f32[1], index: 2, kind: input, shape index: {}]
  %s3 = inlined_call_operand.vmem [shape: f32[2,4,2,128], index: 3, kind: input, shape index: {}]
  %s4 = inlined_call_operand.vmem [shape: f32[2,8,2,128], index: 4, kind: output, shape index: {}]
  %s5 = sld [smem:[#allocation0]]
  $region57: #{prelu_linear_forward.1} parent=0
    _
  %s7 = ssub.s32 1, %s5
  %s8 = scalar_select 0, %s7, %s5
  %9 = sst [smem:[#allocation2]] %s2
  $region1: #{prelu_linear_forward.1} parent=0
    #allocation3 [shape = 'u8[4096]{0}', space=smem, size = 0x1000, scoped, tag = 'input window, operand 0, single buffered']
    #allocation4 [shape = 's32[2]{0}', space=sflag, size = 0x8, scoped, tag = 'scoped memory for prelu_linear_forward.1']
    #allocation5 [shape = 'u8[512]{0}', space=smem, size = 0x200, scoped, tag = 'input window, operand 1, single buffered']
    #allocation6 [shape = 's32[1]{0}', space=sflag, size = 0x4, scoped, tag = 'scoped memory for prelu_linear_forward.1']
    %10 = vsyncpa [#allocation4], 0
    %11 = vsyncpa [#allocation6], 0
    loop: start=0, step=1, limit=4
    $region2: #{prelu_linear_forward.1} parent=1 // loop_pre_header
      _
    $region3: #{prelu_linear_forward.1} parent=1 // loop_header
      %s13 = sphi 0, %s17
      %p14 = scmp.ge.s32.totalorder %s13, 4
      %s20 = sphi 0, %s32
      %s21 = sphi 0, %s28
      %s22 = sphi 0, %s20
      %s23 = sphi 0, %s21
      %s24 = sphi 0, %s22
      %s25 = sphi 0, %s23
      %s33 = sphi 0, %s33
      %s35 = sphi 0, %s33
      %s36 = sphi 0, %s35
      %s50 = sphi 0, %s36
      %s54 = sphi 0, %s54
      %s56 = sphi 0, %s54
      %s57 = sphi 0, %s56
      %s71 = sphi 0, %s57
      %s75 = sphi 0, %s75
      %s77 = sphi 0, %s75
      %s78 = sphi 0, %s77
      %s92 = sphi 0, %s78
      %s100 = sphi 0, %s102
      %s103 = sphi 0, %s100
      %s104 = sphi 0, %s103
      %s120 = sphi 0, %s104
      %s128 = sphi 0, %s130
      %s131 = sphi 0, %s128
      %s132 = sphi 0, %s131
      %s148 = sphi 0, %s132
    $region4: #{prelu_linear_forward.1} parent=1 // loop_header_branch
      %16 = sbr.rel (%p14) target = $region8
    $region5: #{prelu_linear_forward.1} parent=1 // loop_body
      %s18 = ssub.s32 %s13, 1
      %s19 = ssub.s32 %s13, 2
      %s26 = sadd.s32 1, %s21
      %p27 = scmp.ge.s32.totalorder %s26, 1
      %s28 = scalar_select %p27, 0, %s26
      %s29 = sadd.s32 1, %s20
      %s30 = scalar_select %p27, %s29, %s20
      %p31 = scmp.ge.s32.totalorder %s30, 2
      %s32 = scalar_select %p31, 0, %s30
      %s34 = sadd.s32 %s33, 1
      %p37 = scmp.eq.s32.totalorder %s13, 1
      %p38 = scmp.ne.s32.totalorder %s33, %s35
      %p39 = scmp.eq.s32.totalorder %s13, 0
      %p40 = por %p38, %p39
      %p41 = scmp.ne.s32.totalorder %s33, %s35
      %p42 = scmp.eq.s32.totalorder %s18, 1
      %p43 = por %p41, %p42
      %p44 = scmp.ne.s32.totalorder %s35, %s36
      %p45 = scmp.eq.s32.totalorder %s18, 0
      %p46 = por %p44, %p45
      %p47 = scmp.ne.s32.totalorder %s35, %s36
      %p48 = scmp.eq.s32.totalorder %s19, 1
      %p49 = por %p47, %p48
      %p51 = scmp.ne.s32.totalorder %s36, %s50
      %p52 = scmp.eq.s32.totalorder %s19, 0
      %p53 = por %p51, %p52
      %s55 = sadd.s32 %s54, 1
      %p58 = scmp.eq.s32.totalorder %s13, 1
      %p59 = scmp.ne.s32.totalorder %s54, %s56
      %p60 = scmp.eq.s32.totalorder %s13, 0
      %p61 = por %p59, %p60
      %p62 = scmp.ne.s32.totalorder %s54, %s56
      %p63 = scmp.eq.s32.totalorder %s18, 1
      %p64 = por %p62, %p63
      %p65 = scmp.ne.s32.totalorder %s56, %s57
      %p66 = scmp.eq.s32.totalorder %s18, 0
      %p67 = por %p65, %p66
      %p68 = scmp.ne.s32.totalorder %s56, %s57
      %p69 = scmp.eq.s32.totalorder %s19, 1
      %p70 = por %p68, %p69
      %p72 = scmp.ne.s32.totalorder %s57, %s71
      %p73 = scmp.eq.s32.totalorder %s19, 0
      %p74 = por %p72, %p73
      %s76 = sadd.s32 %s75, 1
      %p79 = scmp.eq.s32.totalorder %s13, 1
      %p80 = scmp.ne.s32.totalorder %s75, %s77
      %p81 = scmp.eq.s32.totalorder %s13, 0
      %p82 = por %p80, %p81
      %p83 = scmp.ne.s32.totalorder %s75, %s77
      %p84 = scmp.eq.s32.totalorder %s18, 1
      %p85 = por %p83, %p84
      %p86 = scmp.ne.s32.totalorder %s77, %s78
      %p87 = scmp.eq.s32.totalorder %s18, 0
      %p88 = por %p86, %p87
      %p89 = scmp.ne.s32.totalorder %s77, %s78
      %p90 = scmp.eq.s32.totalorder %s19, 1
      %p91 = por %p89, %p90
      %p93 = scmp.ne.s32.totalorder %s78, %s92
      %p94 = scmp.eq.s32.totalorder %s19, 0
      %p95 = por %p93, %p94
      %s96 = ssub.s32 %s20, %s32
      %s97 = ssub.s32 %s21, %s28
      %s98 = sor.u32 %s96, %s97
      %p99 = scmp.eq.s32.totalorder %s98, 0
      %s101 = sadd.s32 %s100, 1
      %s102 = scalar_select %p99, %s100, %s101
      %p105 = pneg %p99
      %p106 = scmp.eq.s32.totalorder %s13, 1
      %p107 = por %p105, %p106
      %p108 = scmp.ne.s32.totalorder %s100, %s103
      %p109 = scmp.eq.s32.totalorder %s13, 0
      %p110 = por %p108, %p109
      %p111 = scmp.ne.s32.totalorder %s100, %s103
      %p112 = scmp.eq.s32.totalorder %s18, 1
      %p113 = por %p111, %p112
      %p114 = scmp.ne.s32.totalorder %s103, %s104
      %p115 = scmp.eq.s32.totalorder %s18, 0
      %p116 = por %p114, %p115
      %p117 = scmp.ne.s32.totalorder %s103, %s104
      %p118 = scmp.eq.s32.totalorder %s19, 1
      %p119 = por %p117, %p118
      %p121 = scmp.ne.s32.totalorder %s104, %s120
      %p122 = scmp.eq.s32.totalorder %s19, 0
      %p123 = por %p121, %p122
      %s124 = ssub.s32 %s20, %s32
      %s125 = ssub.s32 %s21, %s28
      %s126 = sor.u32 %s124, %s125
      %p127 = scmp.eq.s32.totalorder %s126, 0
      %s129 = sadd.s32 %s128, 1
      %s130 = scalar_select %p127, %s128, %s129
      %p133 = pneg %p127
      %p134 = scmp.eq.s32.totalorder %s13, 1
      %p135 = por %p133, %p134
      %p136 = scmp.ne.s32.totalorder %s128, %s131
      %p137 = scmp.eq.s32.totalorder %s13, 0
      %p138 = por %p136, %p137
      %p139 = scmp.ne.s32.totalorder %s128, %s131
      %p140 = scmp.eq.s32.totalorder %s18, 1
      %p141 = por %p139, %p140
      %p142 = scmp.ne.s32.totalorder %s131, %s132
      %p143 = scmp.eq.s32.totalorder %s18, 0
      %p144 = por %p142, %p143
      %p145 = scmp.ne.s32.totalorder %s131, %s132
      %p146 = scmp.eq.s32.totalorder %s19, 1
      %p147 = por %p145, %p146
      %p149 = scmp.ne.s32.totalorder %s132, %s148
      %p150 = scmp.eq.s32.totalorder %s19, 0
      %p151 = por %p149, %p150
      %p152 = scmp.le.s32.totalorder 1, %s13
      %p153 = scmp.lt.s32.totalorder %s13, 3
      %p154 = pnand %p152, %p153
      %p155 = pneg %p154
      // Predicated region
      $region9: #{prelu_linear_forward.1} parent=5 // pred_check
        _
      $region10: #{prelu_linear_forward.1} parent=5 // pred_check_branch
        %157 = sbr.rel (%p154) target = $region12
      $region11: #{prelu_linear_forward.1} parent=5 // pred_region
        %s158 = ssub.s32 %s13, 1
        // Predicated region
        $region13: #{prelu_linear_forward.1} parent=11 // pred_check
          %p159 = pneg %p46
        $region14: #{prelu_linear_forward.1} parent=11 // pred_check_branch
          %161 = sbr.rel (%p159) target = $region16
        $region15: #{prelu_linear_forward.1} parent=11 // pred_region
          %s163 = ssub.s32 128, 128
          %164 = vsyncadd [#allocation4], %s163
          %s166 = sshll.u32 %s0, 4
          %s167 = int_to_ptr.vmem [resolvable:$true] %s166
          %169 = dma.vmem_to_smem %s167, 128, [#allocation3], [#allocation4]
        $region16: #{prelu_linear_forward.1} parent=11 // pred_fallthru
          _
        // Predicated region
        $region17: #{prelu_linear_forward.1} parent=11 // pred_check
          %p170 = pneg %p67
        $region18: #{prelu_linear_forward.1} parent=11 // pred_check_branch
          %172 = sbr.rel (%p170) target = $region20
        $region19: #{prelu_linear_forward.1} parent=11 // pred_region
          %s174 = ssub.s32 16, 16
          %175 = vsyncadd [#allocation6], %s174
          %s177 = sshll.u32 %s1, 4
          %s178 = int_to_ptr.vmem [resolvable:$true] %s177
          %180 = dma.vmem_to_smem %s178, 16, [#allocation5], [#allocation6]
        $region20: #{prelu_linear_forward.1} parent=11 // pred_fallthru
          _
        // Predicated region
        $region21: #{prelu_linear_forward.1} parent=11 // pred_check
          %p181 = pneg %p88
        $region22: #{prelu_linear_forward.1} parent=11 // pred_check_branch
          %183 = sbr.rel (%p181) target = $region24
        $region23: #{prelu_linear_forward.1} parent=11 // pred_region
          _
        $region24: #{prelu_linear_forward.1} parent=11 // pred_fallthru
          _
      $region12: #{prelu_linear_forward.1} parent=5 // pred_fallthru
        _
      %p184 = scmp.lt.s32.totalorder %s13, 2
      // Predicated region
      $region25: #{prelu_linear_forward.1} parent=5 // pred_check
        %p185 = pneg %p184
      $region26: #{prelu_linear_forward.1} parent=5 // pred_check_branch
        %187 = sbr.rel (%p185) target = $region28
      $region27: #{prelu_linear_forward.1} parent=5 // pred_region
        // Predicated region
        $region29: #{prelu_linear_forward.1} parent=27 // pred_check
          %p188 = pneg %p110
        $region30: #{prelu_linear_forward.1} parent=27 // pred_check_branch
          %190 = sbr.rel (%p188) target = $region32
        $region31: #{prelu_linear_forward.1} parent=27 // pred_region
          %p191 = scmp.lt.s32.totalorder %s20, 1
          %s192 = scalar_select %p191, %s20, 1
          %p193 = scmp.lt.s32.totalorder %s21, 0
          %s194 = scalar_select %p193, %s21, 0
          %s195 = smul.addr %s192, 4
          %s196 = sadd.s32 %s194, %s195
          %s197 = smul.addr %s196, 2
          %s198 = scalar_lea.vmem %s3, %s197
        $region32: #{prelu_linear_forward.1} parent=27 // pred_fallthru
          _
      $region28: #{prelu_linear_forward.1} parent=5 // pred_fallthru
        _
      %p199 = scmp.le.s32.totalorder 1, %s13
      %p200 = scmp.lt.s32.totalorder %s13, 3
      %p201 = pnand %p199, %p200
      %p202 = pneg %p201
      // Predicated region
      $region33: #{prelu_linear_forward.1} parent=5 // pred_check
        _
      $region34: #{prelu_linear_forward.1} parent=5 // pred_check_branch
        %204 = sbr.rel (%p201) target = $region36
      $region35: #{prelu_linear_forward.1} parent=5 // pred_region
        %s205 = ssub.s32 %s13, 1
        // Predicated region
        $region37: #{prelu_linear_forward.1} parent=35 // pred_check
          %p206 = pneg %p46
        $region38: #{prelu_linear_forward.1} parent=35 // pred_check_branch
          %208 = sbr.rel (%p206) target = $region40
        $region39: #{prelu_linear_forward.1} parent=35 // pred_region
          %209 = dma.done [#allocation4], 128
        $region40: #{prelu_linear_forward.1} parent=35 // pred_fallthru
          _
        // Predicated region
        $region41: #{prelu_linear_forward.1} parent=35 // pred_check
          %p210 = pneg %p67
        $region42: #{prelu_linear_forward.1} parent=35 // pred_check_branch
          %212 = sbr.rel (%p210) target = $region44
        $region43: #{prelu_linear_forward.1} parent=35 // pred_region
          %213 = dma.done [#allocation6], 16
        $region44: #{prelu_linear_forward.1} parent=35 // pred_fallthru
          _
        %214 = sfence
        %p215 = pneg %p46
        %p216 = pneg %p43
        %p217 = pneg %p67
        %p218 = pneg %p64
        %p219 = pneg %p88
        %p220 = pneg %p85
        %p221 = scmp.lt.s32.totalorder %s22, 1
        %s222 = scalar_select %p221, %s22, 1
        %p223 = scmp.lt.s32.totalorder %s23, 0
        %s224 = scalar_select %p223, %s23, 0
        %s225 = smul.addr %s222, 4
        %s226 = sadd.s32 %s224, %s225
        %s227 = smul.addr %s226, 2
        %s228 = scalar_lea.vmem %s3, %s227
        %p229 = pneg %p116
        %p230 = pneg %p113
        %p231 = pneg %p144
        %p232 = pneg %p141
        %p233 = scmp.lt.s32.totalorder %s22, 1
        %s234 = scalar_select %p233, %s22, 1
        %p235 = scmp.lt.s32.totalorder %s23, 0
        %s236 = scalar_select %p235, %s23, 0
        %s237 = smul.addr %s234, 8
        %s238 = sadd.s32 %s236, %s237
        %s239 = smul.addr %s238, 2
        %s240 = scalar_lea.vmem %s4, %s239
        %p241 = scmp.lt.s32.totalorder %s22, 1
        %s242 = scalar_select %p241, %s22, 1
        %p243 = scmp.lt.s32.totalorder %s23, 0
        %s244 = scalar_select %p243, %s23, 0
        %s245 = smul.addr %s242, 4
        %s246 = sadd.s32 %s244, %s245
        %s247 = smul.addr %s246, 2
        %s248 = scalar_lea.vmem %s3, %s247
        %p249 = scmp.lt.s32.totalorder %s22, 1
        %s250 = scalar_select %p249, %s22, 1
        %p251 = scmp.lt.s32.totalorder %s23, 0
        %s252 = scalar_select %p251, %s23, 0
        %s253 = smul.addr %s250, 8
        %s254 = sadd.s32 %s252, %s253
        %s255 = smul.addr %s254, 2
        %s256 = scalar_lea.vmem %s4, %s255
        %s257 = sld [smem:[#allocation2]]
        %v258 = vld [vmem:[%s248] sm:$0x3]
        %vm259 = vcmp.gt.f32.partialorder %v258, 0.0
        %v260 = vstv %s257
        %v261 = vmul.f32 %v260, %v258
        %v262 = vsel %vm259, %v258, %v261
        %s263 = sadd.s32 0, 2
        %s264 = scalar_lea.vmem %s248, %s263
        %v265 = vld [vmem:[%s264] sm:$0x3]
        %vm266 = vcmp.gt.f32.partialorder %v265, 0.0
        %v267 = vmul.f32 %v260, %v265
        %v268 = vsel %vm266, %v265, %v267
        %s269 = sadd.s32 0, 4
        %s270 = scalar_lea.vmem %s248, %s269
        %v271 = vld [vmem:[%s270] sm:$0x3]
        %vm272 = vcmp.gt.f32.partialorder %v271, 0.0
        %v273 = vmul.f32 %v260, %v271
        %v274 = vsel %vm272, %v271, %v273
        %s275 = sadd.s32 0, 6
        %s276 = scalar_lea.vmem %s248, %s275
        %v277 = vld [vmem:[%s276] sm:$0x3]
        %vm278 = vcmp.gt.f32.partialorder %v277, 0.0
        %v279 = vmul.f32 %v260, %v277
        %v280 = vsel %vm278, %v277, %v279
        %s281 = sld [smem:[#allocation3]]
        %v282 = vstv %s281
        %v283 = vmul.f32 %v282, %v262
        %s284 = sld [smem:[#allocation3 + $0x1]]
        %v285 = vstv %s284
        %v286 = vmul.f32 %v285, %v268
        %v287 = vadd.f32 %v283, %v286
        %s288 = sld [smem:[#allocation3 + $0x2]]
        %v289 = vstv %s288
        %v290 = vmul.f32 %v289, %v274
        %v291 = vadd.f32 %v287, %v290
        %s292 = sld [smem:[#allocation3 + $0x3]]
        %v293 = vstv %s292
        %v294 = vmul.f32 %v293, %v280
        %v295 = vadd.f32 %v291, %v294
        %s296 = sld [smem:[#allocation5]]
        %v297 = vstv %s296
        %v298 = vadd.f32 %v295, %v297
        %299 = vst [vmem:[%s256] sm:$0x3] %v298
        %s300 = sld [smem:[#allocation3 + $0x80]]
        %v301 = vstv %s300
        %v302 = vmul.f32 %v301, %v262
        %s303 = sld [smem:[#allocation3 + $0x81]]
        %v304 = vstv %s303
        %v305 = vmul.f32 %v304, %v268
        %v306 = vadd.f32 %v302, %v305
        %s307 = sld [smem:[#allocation3 + $0x82]]
        %v308 = vstv %s307
        %v309 = vmul.f32 %v308, %v274
        %v310 = vadd.f32 %v306, %v309
        %s311 = sld [smem:[#allocation3 + $0x83]]
        %v312 = vstv %s311
        %v313 = vmul.f32 %v312, %v280
        %v314 = vadd.f32 %v310, %v313
        %s315 = sld [smem:[#allocation5 + $0x1]]
        %v316 = vstv %s315
        %v317 = vadd.f32 %v314, %v316
        %s318 = scalar_lea.vmem %s256, %s263
        %319 = vst [vmem:[%s318] sm:$0x3] %v317
        %s320 = sld [smem:[#allocation3 + $0x100]]
        %v321 = vstv %s320
        %v322 = vmul.f32 %v321, %v262
        %s323 = sld [smem:[#allocation3 + $0x101]]
        %v324 = vstv %s323
        %v325 = vmul.f32 %v324, %v268
        %v326 = vadd.f32 %v322, %v325
        %s327 = sld [smem:[#allocation3 + $0x102]]
        %v328 = vstv %s327
        %v329 = vmul.f32 %v328, %v274
        %v330 = vadd.f32 %v326, %v329
        %s331 = sld [smem:[#allocation3 + $0x103]]
        %v332 = vstv %s331
        %v333 = vmul.f32 %v332, %v280
        %v334 = vadd.f32 %v330, %v333
        %s335 = sld [smem:[#allocation5 + $0x2]]
        %v336 = vstv %s335
        %v337 = vadd.f32 %v334, %v336
        %s338 = scalar_lea.vmem %s256, %s269
        %339 = vst [vmem:[%s338] sm:$0x3] %v337
        %s340 = sld [smem:[#allocation3 + $0x180]]
        %v341 = vstv %s340
        %v342 = vmul.f32 %v341, %v262
        %s343 = sld [smem:[#allocation3 + $0x181]]
        %v344 = vstv %s343
        %v345 = vmul.f32 %v344, %v268
        %v346 = vadd.f32 %v342, %v345
        %s347 = sld [smem:[#allocation3 + $0x182]]
        %v348 = vstv %s347
        %v349 = vmul.f32 %v348, %v274
        %v350 = vadd.f32 %v346, %v349
        %s351 = sld [smem:[#allocation3 + $0x183]]
        %v352 = vstv %s351
        %v353 = vmul.f32 %v352, %v280
        %v354 = vadd.f32 %v350, %v353
        %s355 = sld [smem:[#allocation5 + $0x3]]
        %v356 = vstv %s355
        %v357 = vadd.f32 %v354, %v356
        %s358 = scalar_lea.vmem %s256, %s275
        %359 = vst [vmem:[%s358] sm:$0x3] %v357
        %s360 = sld [smem:[#allocation3 + $0x200]]
        %v361 = vstv %s360
        %v362 = vmul.f32 %v361, %v262
        %s363 = sld [smem:[#allocation3 + $0x201]]
        %v364 = vstv %s363
        %v365 = vmul.f32 %v364, %v268
        %v366 = vadd.f32 %v362, %v365
        %s367 = sld [smem:[#allocation3 + $0x202]]
        %v368 = vstv %s367
        %v369 = vmul.f32 %v368, %v274
        %v370 = vadd.f32 %v366, %v369
        %s371 = sld [smem:[#allocation3 + $0x203]]
        %v372 = vstv %s371
        %v373 = vmul.f32 %v372, %v280
        %v374 = vadd.f32 %v370, %v373
        %s375 = sld [smem:[#allocation5 + $0x4]]
        %v376 = vstv %s375
        %v377 = vadd.f32 %v374, %v376
        %s378 = sadd.s32 0, 8
        %s379 = scalar_lea.vmem %s256, %s378
        %380 = vst [vmem:[%s379] sm:$0x3] %v377
        %s381 = sld [smem:[#allocation3 + $0x280]]
        %v382 = vstv %s381
        %v383 = vmul.f32 %v382, %v262
        %s384 = sld [smem:[#allocation3 + $0x281]]
        %v385 = vstv %s384
        %v386 = vmul.f32 %v385, %v268
        %v387 = vadd.f32 %v383, %v386
        %s388 = sld [smem:[#allocation3 + $0x282]]
        %v389 = vstv %s388
        %v390 = vmul.f32 %v389, %v274
        %v391 = vadd.f32 %v387, %v390
        %s392 = sld [smem:[#allocation3 + $0x283]]
        %v393 = vstv %s392
        %v394 = vmul.f32 %v393, %v280
        %v395 = vadd.f32 %v391, %v394
        %s396 = sld [smem:[#allocation5 + $0x5]]
        %v397 = vstv %s396
        %v398 = vadd.f32 %v395, %v397
        %s399 = sadd.s32 0, 10
        %s400 = scalar_lea.vmem %s256, %s399
        %401 = vst [vmem:[%s400] sm:$0x3] %v398
        %s402 = sld [smem:[#allocation3 + $0x300]]
        %v403 = vstv %s402
        %v404 = vmul.f32 %v403, %v262
        %s405 = sld [smem:[#allocation3 + $0x301]]
        %v406 = vstv %s405
        %v407 = vmul.f32 %v406, %v268
        %v408 = vadd.f32 %v404, %v407
        %s409 = sld [smem:[#allocation3 + $0x302]]
        %v410 = vstv %s409
        %v411 = vmul.f32 %v410, %v274
        %v412 = vadd.f32 %v408, %v411
        %s413 = sld [smem:[#allocation3 + $0x303]]
        %v414 = vstv %s413
        %v415 = vmul.f32 %v414, %v280
        %v416 = vadd.f32 %v412, %v415
        %s417 = sld [smem:[#allocation5 + $0x6]]
        %v418 = vstv %s417
        %v419 = vadd.f32 %v416, %v418
        %s420 = sadd.s32 0, 12
        %s421 = scalar_lea.vmem %s256, %s420
        %422 = vst [vmem:[%s421] sm:$0x3] %v419
        %s423 = sld [smem:[#allocation3 + $0x380]]
        %v424 = vstv %s423
        %v425 = vmul.f32 %v424, %v262
        %s426 = sld [smem:[#allocation3 + $0x381]]
        %v427 = vstv %s426
        %v428 = vmul.f32 %v427, %v268
        %v429 = vadd.f32 %v425, %v428
        %s430 = sld [smem:[#allocation3 + $0x382]]
        %v431 = vstv %s430
        %v432 = vmul.f32 %v431, %v274
        %v433 = vadd.f32 %v429, %v432
        %s434 = sld [smem:[#allocation3 + $0x383]]
        %v435 = vstv %s434
        %v436 = vmul.f32 %v435, %v280
        %v437 = vadd.f32 %v433, %v436
        %s438 = sld [smem:[#allocation5 + $0x7]]
        %v439 = vstv %s438
        %v440 = vadd.f32 %v437, %v439
        %s441 = sadd.s32 0, 14
        %s442 = scalar_lea.vmem %s256, %s441
        %443 = vst [vmem:[%s442] sm:$0x3] %v440
        %p444 = scmp.lt.s32.totalorder %s22, 1
        %s445 = scalar_select %p444, %s22, 1
        %p446 = scmp.lt.s32.totalorder %s23, 0
        %s447 = scalar_select %p446, %s23, 0
        %s448 = smul.addr %s445, 8
        %s449 = sadd.s32 %s447, %s448
        %s450 = smul.addr %s449, 2
        %s451 = scalar_lea.vmem %s4, %s450
        // Predicated region
        $region45: #{prelu_linear_forward.1} parent=35 // pred_check
          %p452 = pneg %p141
        $region46: #{prelu_linear_forward.1} parent=35 // pred_check_branch
          %454 = sbr.rel (%p452) target = $region48
        $region47: #{prelu_linear_forward.1} parent=35 // pred_region
          _
        $region48: #{prelu_linear_forward.1} parent=35 // pred_fallthru
          _
      $region36: #{prelu_linear_forward.1} parent=5 // pred_fallthru
        _
      %p455 = scmp.le.s32.totalorder 2, %s13
      // Predicated region
      $region49: #{prelu_linear_forward.1} parent=5 // pred_check
        %p456 = pneg %p455
      $region50: #{prelu_linear_forward.1} parent=5 // pred_check_branch
        %458 = sbr.rel (%p456) target = $region52
      $region51: #{prelu_linear_forward.1} parent=5 // pred_region
        %s459 = ssub.s32 %s13, 2
        // Predicated region
        $region53: #{prelu_linear_forward.1} parent=51 // pred_check
          %p460 = pneg %p147
        $region54: #{prelu_linear_forward.1} parent=51 // pred_check_branch
          %462 = sbr.rel (%p460) target = $region56
        $region55: #{prelu_linear_forward.1} parent=51 // pred_region
          %p463 = scmp.lt.s32.totalorder %s24, 1
          %s464 = scalar_select %p463, %s24, 1
          %p465 = scmp.lt.s32.totalorder %s25, 0
          %s466 = scalar_select %p465, %s25, 0
          %s467 = smul.addr %s464, 8
          %s468 = sadd.s32 %s466, %s467
          %s469 = smul.addr %s468, 2
          %s470 = scalar_lea.vmem %s4, %s469
        $region56: #{prelu_linear_forward.1} parent=51 // pred_fallthru
          _
      $region52: #{prelu_linear_forward.1} parent=5 // pred_fallthru
        _
    $region6: #{prelu_linear_forward.1} parent=1 // loop_footer
      %s17 = sadd.s32 1, %s13
    $region7: #{prelu_linear_forward.1} parent=1 // loop_footer_branch
      %12 = sbr.rel target = $region3
    $region8: #{prelu_linear_forward.1} parent=1 // loop_exit
      _
    %471 = vsyncpa [#allocation4], 1
    %s472 = scalar_lea.sflag [#allocation4], 1
    %473 = vsyncpa %s472, 1
    %474 = vsyncpa [#allocation6], 1

</llo_original>
